<compile_context>
chip_gen: v7x
topology: tpu7x:2x2x1
jax: 0.10.0
libtpu: 0.0.40
codegen_flags: <defaults>
</compile_context>

<pallas_src>
import jax
import jax.numpy as jnp
from jax.experimental import pallas as pl
from jax.experimental.pallas import tpu as pltpu


def _make_accuracy_kernel(topk, batch_size, tile_b, nk):
    """Build the per-tile kernel; topk / sizes are static Python values."""

    def kernel(x_ref, t_ref, o_ref):
        # (TB, C) logits; upcast in-kernel (VPU work hides under the DMA).
        x = x_ref[...].astype(jnp.float32)
        t = t_ref[...]                                    # (TB, 1) int32 targets
        tb, c = x.shape

        col = jax.lax.broadcasted_iota(jnp.int32, (tb, c), 1)
        # Gather the target logit per row via its one-hot mask.
        tgt_logit = jnp.sum(jnp.where(col == t, x, 0.0), axis=1, keepdims=True)
        # Descending-order rank of the target class (ties -> lower index wins).
        beats = (x > tgt_logit) | ((x == tgt_logit) & (col < t))
        rank = jnp.sum(beats.astype(jnp.int32), axis=1, keepdims=True)  # (TB,1)

        # Mask rows past the true batch size (partial tail tile).
        row = (pl.program_id(0) * tile_b
               + jax.lax.broadcasted_iota(jnp.int32, (tb, 1), 0))
        valid = row < batch_size

        # Per-k correct counts for this tile, written into lane i of the
        # (1, nk) partial-count row.  k values are static Python ints, so each
        # compare is a scalar-constant VPU compare + a full reduce.
        lane = jax.lax.broadcasted_iota(jnp.int32, (1, nk), 1)
        out = jnp.zeros((1, nk), dtype=jnp.float32)
        for i, k in enumerate(topk):
            count_k = jnp.sum(jnp.where((rank < k) & valid, 1.0, 0.0))
            out = out + jnp.where(lane == i, count_k, 0.0)
        o_ref[0] = out

    return kernel


def _pick_batch_tile(batch, num_classes, itemsize, target_bytes=1 << 21):
    """Largest aligned row tile keeping one logits block ~<= 2 MiB.

    2 inputs x 2 pipeline buffers then stays far below the scoped-VMEM
    defaults on v5e/v6e and comfortably within v7x's smaller VMEM budget.
    """
    align = 8 * max(1, 4 // max(1, itemsize))   # 8 rows for f32, 16 for bf16
    rows = target_bytes // max(1, num_classes * itemsize)
    rows = max(align, (rows // align) * align)
    if rows >= batch:
        return batch            # single full-batch block (always a legal shape)
    return int(rows)


def accuracy(outputs, targets, topk=(1,), block_batch=None):
    """Pallas-backed equivalent of Accuracy(topk)(outputs, targets)."""
    B, C = outputs.shape
    topk = tuple(int(k) for k in topk)
    nk = len(topk)

    itemsize = jnp.dtype(outputs.dtype).itemsize
    align = 8 * max(1, 4 // max(1, itemsize))
    if block_batch is None:
        TB = _pick_batch_tile(B, C, itemsize)
    else:
        TB = min(int(block_batch), B)
        if TB < B and TB % align != 0:
            TB = max(align, (TB // align) * align)
    num_tiles = (B + TB - 1) // TB

    t2 = targets.astype(jnp.int32).reshape(B, 1)

    partials = pl.pallas_call(
        _make_accuracy_kernel(topk, B, TB, nk),
        out_shape=jax.ShapeDtypeStruct((num_tiles, 1, nk), jnp.float32),
        grid=(num_tiles,),
        in_specs=[
            pl.BlockSpec((TB, C), lambda i: (i, 0)),    # logits tile
            pl.BlockSpec((TB, 1), lambda i: (i, 0)),    # targets tile
        ],
        out_specs=pl.BlockSpec((1, 1, nk), lambda i: (i, 0, 0)),
        compiler_params=pltpu.CompilerParams(
            dimension_semantics=("parallel",)),
    )(outputs, t2)

    # Tiny final reduce + scale in plain JAX (divisor = global batch size).
    counts = jnp.sum(partials.reshape(num_tiles, nk), axis=0)    # (nk,)
    res = counts * (100.0 / B)
    # Match PyTorch: a list, one (1,)-shaped tensor per k.
    return [res[i:i + 1] for i in range(nk)]


def _reference_accuracy(outputs, targets, topk):
    # Stable argsort: ties broken by lower class index, same as the kernel.
    order = jnp.argsort(-outputs.astype(jnp.float32), axis=1)
    res = []
    for k in topk:
        hit = jnp.any(order[:, :k] == targets[:, None], axis=1)
        res.append(jnp.mean(hit.astype(jnp.float32)) * 100.0)
    return res


if __name__ == "__main__":
    key = jax.random.PRNGKey(0)
    k1, k2 = jax.random.split(key)
    B, C = 20, 32
    topk = (1, 5)

    outputs = jax.random.normal(k1, (B, C), dtype=jnp.float32)
    targets = jax.random.randint(k2, (B,), 0, C, dtype=jnp.int32)

    # f32 logits, auto tile size (single full-batch block at this tiny shape).
    res = accuracy(outputs, targets, topk=topk)
    jax.block_until_ready(res)
    for k, r, ref in zip(topk, res, _reference_accuracy(outputs, targets, topk)):
        assert r.shape == (1,)
        assert jnp.allclose(r[0], ref, atol=1e-5), (k, r, ref)

    # bf16 logits read directly, forced multi-tile grid with a masked partial
    # tail tile (B=20, TB=16 -> 2 tiles, last tile has 4 valid rows).
    outputs_bf16 = outputs.astype(jnp.bfloat16)
    res_bf = accuracy(outputs_bf16, targets, topk=topk, block_batch=16)
    jax.block_until_ready(res_bf)
    for k, r, ref in zip(topk, res_bf,
                         _reference_accuracy(outputs_bf16, targets, topk)):
        assert r.shape == (1,)
        assert jnp.allclose(r[0], ref, atol=1e-5), (k, r, ref)

    print("KERNEL_OK")
</pallas_src>

<mosaic_0001>
module attributes {stable_mosaic.version = 11 : i64} {
  func.func @kernel(%arg0: i32, %arg1: memref<20x32xf32, #tpu.memory_space<vmem>>, %arg2: memref<20x1xi32, #tpu.memory_space<vmem>>, %arg3: memref<1x1x2xf32, #tpu.memory_space<vmem>>) attributes {dimension_semantics = [#tpu.dimension_semantics<parallel>], iteration_bounds = array<i64: 1>, scalar_prefetch = 0 : i64, scratch_operands = 0 : i64, tpu.core_type = #tpu.core_type<tc>, window_params = [{transform_indices = @transform_0, window_bounds = array<i64: 20, 32>}, {transform_indices = @transform_1, window_bounds = array<i64: 20, 1>}, {transform_indices = @transform_2, window_bounds = array<i64: 1, 1, 2>}]} {
    %c0 = arith.constant 0 : index
    %c0_0 = arith.constant 0 : index
    %0 = vector.load %arg1[%c0, %c0_0] : memref<20x32xf32, #tpu.memory_space<vmem>>, vector<20x32xf32>
    %c0_1 = arith.constant 0 : index
    %c0_2 = arith.constant 0 : index
    %1 = vector.load %arg2[%c0_1, %c0_2] : memref<20x1xi32, #tpu.memory_space<vmem>>, vector<20x1xi32>
    %2 = tpu.iota {dimensions = array<i32: 1>} : vector<20x32xi32>
    %3 = vector.broadcast %1 : vector<20x1xi32> to vector<20x32xi32>
    %4 = arith.cmpi eq, %2, %3 : vector<20x32xi32>
    %cst = arith.constant 0.000000e+00 : f32
    %5 = vector.broadcast %cst : f32 to vector<20x32xf32>
    %6 = arith.select %4, %0, %5 : vector<20x32xi1>, vector<20x32xf32>
    %cst_3 = arith.constant dense<0.000000e+00> : vector<20xf32>
    %7 = vector.multi_reduction <add>, %6, %cst_3 [1] : vector<20x32xf32> to vector<20xf32>
    %8 = vector.shape_cast %7 : vector<20xf32> to vector<20x1xf32>
    %9 = vector.broadcast %8 : vector<20x1xf32> to vector<20x32xf32>
    %10 = arith.cmpf ogt, %0, %9 : vector<20x32xf32>
    %11 = vector.broadcast %8 : vector<20x1xf32> to vector<20x32xf32>
    %12 = arith.cmpf oeq, %0, %11 : vector<20x32xf32>
    %13 = vector.broadcast %1 : vector<20x1xi32> to vector<20x32xi32>
    %14 = arith.cmpi slt, %2, %13 : vector<20x32xi32>
    %15 = arith.andi %12, %14 : vector<20x32xi1>
    %16 = arith.ori %10, %15 : vector<20x32xi1>
    %17 = arith.extui %16 : vector<20x32xi1> to vector<20x32xi32>
    %cst_4 = arith.constant dense<0> : vector<20xi32>
    %18 = vector.multi_reduction <add>, %17, %cst_4 [1] : vector<20x32xi32> to vector<20xi32>
    %19 = vector.shape_cast %18 : vector<20xi32> to vector<20x1xi32>
    %c20_i32 = arith.constant 20 : i32
    %20 = arith.muli %arg0, %c20_i32 : i32
    %21 = tpu.iota {dimensions = array<i32: 0>} : vector<20x1xi32>
    %22 = vector.broadcast %20 : i32 to vector<20x1xi32>
    %23 = arith.addi %22, %21 : vector<20x1xi32>
    %c20_i32_5 = arith.constant 20 : i32
    %24 = vector.broadcast %c20_i32_5 : i32 to vector<20x1xi32>
    %25 = arith.cmpi slt, %23, %24 : vector<20x1xi32>
    %26 = tpu.iota {dimensions = array<i32: 1>} : vector<1x2xi32>
    %cst_6 = arith.constant 0.000000e+00 : f32
    %27 = vector.broadcast %cst_6 : f32 to vector<1x2xf32>
    %c1_i32 = arith.constant 1 : i32
    %28 = vector.broadcast %c1_i32 : i32 to vector<20x1xi32>
    %29 = arith.cmpi slt, %19, %28 : vector<20x1xi32>
    %30 = arith.andi %29, %25 : vector<20x1xi1>
    %cst_7 = arith.constant 1.000000e+00 : f32
    %cst_8 = arith.constant 0.000000e+00 : f32
    %31 = vector.broadcast %cst_7 : f32 to vector<20x1xf32>
    %32 = vector.broadcast %cst_8 : f32 to vector<20x1xf32>
    %33 = arith.select %30, %31, %32 : vector<20x1xi1>, vector<20x1xf32>
    %34 = vector.shape_cast %33 : vector<20x1xf32> to vector<1x20x1xf32>
    %cst_9 = arith.constant dense<0.000000e+00> : vector<1xf32>
    %35 = vector.multi_reduction <add>, %34, %cst_9 [1, 2] : vector<1x20x1xf32> to vector<1xf32>
    %36 = vector.shape_cast %35 : vector<1xf32> to vector<1x1x1xf32>
    %37 = vector.extract %36[0, 0, 0] : f32 from vector<1x1x1xf32>
    %c0_i32 = arith.constant 0 : i32
    %38 = vector.broadcast %c0_i32 : i32 to vector<1x2xi32>
    %39 = arith.cmpi eq, %26, %38 : vector<1x2xi32>
    %cst_10 = arith.constant 0.000000e+00 : f32
    %40 = vector.broadcast %37 : f32 to vector<1x2xf32>
    %41 = vector.broadcast %cst_10 : f32 to vector<1x2xf32>
    %42 = arith.select %39, %40, %41 : vector<1x2xi1>, vector<1x2xf32>
    %43 = arith.addf %27, %42 : vector<1x2xf32>
    %c5_i32 = arith.constant 5 : i32
    %44 = vector.broadcast %c5_i32 : i32 to vector<20x1xi32>
    %45 = arith.cmpi slt, %19, %44 : vector<20x1xi32>
    %46 = arith.andi %45, %25 : vector<20x1xi1>
    %cst_11 = arith.constant 1.000000e+00 : f32
    %cst_12 = arith.constant 0.000000e+00 : f32
    %47 = vector.broadcast %cst_11 : f32 to vector<20x1xf32>
    %48 = vector.broadcast %cst_12 : f32 to vector<20x1xf32>
    %49 = arith.select %46, %47, %48 : vector<20x1xi1>, vector<20x1xf32>
    %50 = vector.shape_cast %49 : vector<20x1xf32> to vector<1x20x1xf32>
    %cst_13 = arith.constant dense<0.000000e+00> : vector<1xf32>
    %51 = vector.multi_reduction <add>, %50, %cst_13 [1, 2] : vector<1x20x1xf32> to vector<1xf32>
    %52 = vector.shape_cast %51 : vector<1xf32> to vector<1x1x1xf32>
    %53 = vector.extract %52[0, 0, 0] : f32 from vector<1x1x1xf32>
    %c1_i32_14 = arith.constant 1 : i32
    %54 = vector.broadcast %c1_i32_14 : i32 to vector<1x2xi32>
    %55 = arith.cmpi eq, %26, %54 : vector<1x2xi32>
    %cst_15 = arith.constant 0.000000e+00 : f32
    %56 = vector.broadcast %53 : f32 to vector<1x2xf32>
    %57 = vector.broadcast %cst_15 : f32 to vector<1x2xf32>
    %58 = arith.select %55, %56, %57 : vector<1x2xi1>, vector<1x2xf32>
    %59 = arith.addf %43, %58 : vector<1x2xf32>
    %c0_16 = arith.constant 0 : index
    %c0_17 = arith.constant 0 : index
    %c0_18 = arith.constant 0 : index
    %60 = vector.load %arg3[%c0_16, %c0_17, %c0_18] : memref<1x1x2xf32, #tpu.memory_space<vmem>>, vector<1x1x2xf32>
    %61 = vector.shape_cast %60 : vector<1x1x2xf32> to vector<1x2xf32>
    %62 = vector.shape_cast %59 : vector<1x2xf32> to vector<1x1x2xf32>
    tpu.vector_store %arg3[%c0_16, %c0_17, %c0_18], %62 {strides = array<i32>} : memref<1x1x2xf32, #tpu.memory_space<vmem>>, vector<1x1x2xf32>,
    return
  }
  func.func @transform_0(%arg0: i32) -> (i32, i32) {
    %c0_i32 = arith.constant 0 : i32
    %c0_i32_0 = arith.constant 0 : i32
    return %arg0, %c0_i32 : i32, i32
  }
  func.func @transform_1(%arg0: i32) -> (i32, i32) {
    %c0_i32 = arith.constant 0 : i32
    %c0_i32_0 = arith.constant 0 : i32
    return %arg0, %c0_i32 : i32, i32
  }
  func.func @transform_2(%arg0: i32) -> (i32, i32, i32) {
    %c0_i32 = arith.constant 0 : i32
    %c0_i32_0 = arith.constant 0 : i32
    %c0_i32_1 = arith.constant 0 : i32
    return %arg0, %c0_i32, %c0_i32_0 : i32, i32, i32
  }
}

</mosaic_0001>

<llo_original>
// kernel: tpu_custom_call.1
$region0: #{tpu_custom_call.1}
  #allocation0 [shape = 'u32[]', space=smem, size = 0x4, offset = 0x4, fixed_abs, tag = 'smem constant byte address 0x4 - core index']
  #allocation1 [shape = 'u32[144,128]{1,0:T(1,128)}', space=vmem, size = 0x12000, scoped, tag = 'internal scratch']
  %s0 = inlined_call_operand.vmem [shape: f32[20,32], index: 0, kind: input, shape index: {}]
  %s1 = inlined_call_operand.vmem [shape: s32[20,1], index: 1, kind: input, shape index: {}]
  %s2 = inlined_call_operand.hbm [shape: f32[1,1,2], index: 2, kind: output, shape index: {}]
  %s3 = sld [smem:[#allocation0]]
  $region18: #{tpu_custom_call.1} parent=0
    _
  %s5 = ssub.s32 1, %s3
  %s6 = scalar_select 0, %s5, %s3
  $region1: #{tpu_custom_call.1} parent=0
    #allocation2 [shape = 'u8[512]{0}', space=vmem, size = 0x400, scoped, tag = 'output window, operand 0, single buffered']
    #allocation3 [shape = 's32[1]{0}', space=sflag, size = 0x4, scoped, tag = 'scoped memory for tpu_custom_call.1']
    %7 = vsyncpa [#allocation3], 0
    // Predicated region
    $region2: #{tpu_custom_call.1} parent=1 // pred_check
      _
    $region3: #{tpu_custom_call.1} parent=1 // pred_check_branch
      %9 = sbr.rel (0) target = $region5
    $region4: #{tpu_custom_call.1} parent=1 // pred_region
      _
    $region5: #{tpu_custom_call.1} parent=1 // pred_fallthru
      _
    // Predicated region
    $region6: #{tpu_custom_call.1} parent=1 // pred_check
      _
    $region7: #{tpu_custom_call.1} parent=1 // pred_check_branch
      %11 = sbr.rel (0) target = $region9
    $region8: #{tpu_custom_call.1} parent=1 // pred_region
      _
    $region9: #{tpu_custom_call.1} parent=1 // pred_fallthru
      _
    %v12 = vld [vmem:[%s0] sm:$0xff]
    %v13 = vld [vmem:[%s0 + $0x8] sm:$0xff]
    %v14 = vld [vmem:[%s0 + $0x10] sm:$0xf]
    %v15 = vld [vmem:[%s1] sm:$0xff]
    %v16 = vld [vmem:[%s1 + $0x8] sm:$0xff]
    %v17 = vld [vmem:[%s1 + $0x10] sm:$0xf]
    %v18 = vlaneseq
    %v19 = vand.u32 %v18, 127
    %20 = vset.pattern.permute.xlu0 0
    %21 = vperm.xlu0 %20, %v15
    %v22 = vpop.permute.xlu0 %21
    %23 = vset.pattern.permute.xlu0 0
    %24 = vperm.xlu0 %23, %v16
    %v25 = vpop.permute.xlu0 %24
    %26 = vset.pattern.permute.xlu0 0
    %27 = vperm.xlu0 %26, %v17
    %v28 = vpop.permute.xlu0 %27
    %vm29 = vcmp.eq.s32.totalorder %v19, %v22
    %vm30 = vcmp.eq.s32.totalorder %v19, %v25
    %vm31 = vcmp.eq.s32.totalorder %v19, %v28
    %v32 = vsel %vm29, %v12, 0.0
    %v33 = vsel %vm30, %v13, 0.0
    %v34 = vsel %vm31, %v14, 0.0
    %vm35 = vcmask 261120
    %v36 = vsel %vm35, %v32, 0.0
    %37 = vadd.xlane.f32.xlu0 %v36
    %v38 = vpop.xlane.xlu0 %37
    %v39 = vsel %vm35, %v33, 0.0
    %40 = vadd.xlane.f32.xlu0 %v39
    %v41 = vpop.xlane.xlu0 %40
    %vm42 = vcmask 257024
    %v43 = vsel %vm42, %v34, 0.0
    %44 = vadd.xlane.f32.xlu0 %v43
    %v45 = vpop.xlane.xlu0 %44
    %vm46 = vcmp.gt.f32.partialorder %v12, %v38
    %vm47 = vcmp.gt.f32.partialorder %v13, %v41
    %vm48 = vcmp.gt.f32.partialorder %v14, %v45
    %vm49 = vcmp.eq.f32.partialorder %v12, %v38
    %vm50 = vcmp.eq.f32.partialorder %v13, %v41
    %vm51 = vcmp.eq.f32.partialorder %v14, %v45
    %vm52 = vcmp.lt.s32.totalorder %v19, %v22
    %vm53 = vcmp.lt.s32.totalorder %v19, %v25
    %vm54 = vcmp.lt.s32.totalorder %v19, %v28
    %vm55 = vmand %vm49, %vm52
    %vm56 = vmand %vm50, %vm53
    %vm57 = vmand %vm51, %vm54
    %vm58 = vmor %vm46, %vm55
    %vm59 = vmor %vm47, %vm56
    %vm60 = vmor %vm48, %vm57
    %v61 = vsel %vm58, 1, 0
    %v62 = vsel %vm59, 1, 0
    %v63 = vsel %vm60, 1, 0
    %v64 = vsel %vm35, %v61, 0
    %v65 = vand.u32 %v64, 65535
    %v66 = vshrl.u32 %v64, 16
    %v67 = vcvt.s32.f32 %v65
    %v68 = vcvt.s32.f32 %v66
    %69 = vadd.xlane.f32.xlu0 %v67
    %v70 = vpop.xlane.xlu0 %69
    %71 = vadd.xlane.f32.xlu0 %v68
    %v72 = vpop.xlane.xlu0 %71
    %v73 = vcvt.f32.s32 %v70
    %v74 = vcvt.f32.s32 %v72
    %v75 = vshll.u32 %v74, 16
    %v76 = vadd.s32 %v75, %v73
    %v77 = vsel %vm35, %v62, 0
    %v78 = vand.u32 %v77, 65535
    %v79 = vshrl.u32 %v77, 16
    %v80 = vcvt.s32.f32 %v78
    %v81 = vcvt.s32.f32 %v79
    %82 = vadd.xlane.f32.xlu0 %v80
    %v83 = vpop.xlane.xlu0 %82
    %84 = vadd.xlane.f32.xlu0 %v81
    %v85 = vpop.xlane.xlu0 %84
    %v86 = vcvt.f32.s32 %v83
    %v87 = vcvt.f32.s32 %v85
    %v88 = vshll.u32 %v87, 16
    %v89 = vadd.s32 %v88, %v86
    %v90 = vsel %vm42, %v63, 0
    %v91 = vand.u32 %v90, 65535
    %v92 = vshrl.u32 %v90, 16
    %v93 = vcvt.s32.f32 %v91
    %v94 = vcvt.s32.f32 %v92
    %95 = vadd.xlane.f32.xlu0 %v93
    %v96 = vpop.xlane.xlu0 %95
    %97 = vadd.xlane.f32.xlu0 %v94
    %v98 = vpop.xlane.xlu0 %97
    %v99 = vcvt.f32.s32 %v96
    %v100 = vcvt.f32.s32 %v98
    %v101 = vshll.u32 %v100, 16
    %v102 = vadd.s32 %v101, %v99
    %s103 = smul.u32 0, 20
    %v104 = vlaneseq
    %v105 = vshrl.u32 %v104, 7
    %v106 = vadd.s32 %v105, 8
    %v107 = vadd.s32 %v105, 16
    %v108 = vstv %s103
    %v109 = vadd.s32 %v108, %v105
    %v110 = vadd.s32 %v108, %v106
    %v111 = vadd.s32 %v108, %v107
    %vm112 = vcmp.lt.s32.totalorder %v109, 20
    %vm113 = vcmp.lt.s32.totalorder %v110, 20
    %vm114 = vcmp.lt.s32.totalorder %v111, 20
    %vm115 = vcmp.lt.s32.totalorder %v76, 1
    %vm116 = vcmp.lt.s32.totalorder %v89, 1
    %vm117 = vcmp.lt.s32.totalorder %v102, 1
    %vm118 = vmand %vm115, %vm112
    %vm119 = vmand %vm116, %vm113
    %vm120 = vmand %vm117, %vm114
    %v121 = vsel %vm118, 1.0, 0.0
    %v122 = vsel %vm119, 1.0, 0.0
    %v123 = vsel %vm120, 1.0, 0.0
    %vm124 = vcmask 7168
    %v125 = vsel %vm124, %v121, 0.0
    %v126 = vsel %vm124, %v122, 0.0
    %v127 = vadd.f32 %v125, %v126
    %vm128 = vcmask 3072
    %v129 = vsel %vm128, %v123, 0.0
    %v130 = vadd.f32 %v127, %v129
    %131 = vadd.xlane.f32.xlu0 %v130
    %v132 = vpop.xlane.xlu0 %131
    %v133 = vrot.slane %v132, 4
    %v134 = vadd.f32 %v132, %v133
    %v135 = vrot.slane %v134, 2
    %v136 = vadd.f32 %v134, %v135
    %v137 = vrot.slane %v136, 1
    %v138 = vadd.f32 %v136, %v137
    %s139 = vtos %v138
    %vm140 = vcmp.eq.s32.totalorder %v19, 0
    %v141 = vstv %s139
    %v142 = vsel %vm140, %v141, 0.0
    %v143 = vadd.f32 %v142, 0.0
    %vm144 = vcmp.lt.s32.totalorder %v76, 5
    %vm145 = vcmp.lt.s32.totalorder %v89, 5
    %vm146 = vcmp.lt.s32.totalorder %v102, 5
    %vm147 = vmand %vm144, %vm112
    %vm148 = vmand %vm145, %vm113
    %vm149 = vmand %vm146, %vm114
    %v150 = vsel %vm147, 1.0, 0.0
    %v151 = vsel %vm148, 1.0, 0.0
    %v152 = vsel %vm149, 1.0, 0.0
    %v153 = vsel %vm124, %v150, 0.0
    %v154 = vsel %vm124, %v151, 0.0
    %v155 = vadd.f32 %v153, %v154
    %v156 = vsel %vm128, %v152, 0.0
    %v157 = vadd.f32 %v155, %v156
    %158 = vadd.xlane.f32.xlu0 %v157
    %v159 = vpop.xlane.xlu0 %158
    %v160 = vrot.slane %v159, 4
    %v161 = vadd.f32 %v159, %v160
    %v162 = vrot.slane %v161, 2
    %v163 = vadd.f32 %v161, %v162
    %v164 = vrot.slane %v163, 1
    %v165 = vadd.f32 %v163, %v164
    %s166 = vtos %v165
    %vm167 = vcmp.eq.s32.totalorder %v19, 1
    %v168 = vstv %s166
    %v169 = vsel %vm167, %v168, 0.0
    %v170 = vadd.f32 %v143, %v169
    %vm171 = vcmask 8192
    %172 = vst.msk [vmem:[#allocation2] sm:$0x1] %vm171, %v170
    // Predicated region
    $region10: #{tpu_custom_call.1} parent=1 // pred_check
      _
    $region11: #{tpu_custom_call.1} parent=1 // pred_check_branch
      %174 = sbr.rel (0) target = $region13
    $region12: #{tpu_custom_call.1} parent=1 // pred_region
      %s176 = ssub.s32 16, 16
      %177 = vsyncadd [#allocation3], %s176
      %s179 = sshll.u32 [#allocation2], 4
      %s180 = int_to_ptr.vmem [resolvable:$true] %s179
      %182 = dma.vmem_to_hbm [thread:$0]  %s180, 16, %s2, [#allocation3]
    $region13: #{tpu_custom_call.1} parent=1 // pred_fallthru
      _
    // Predicated region
    $region14: #{tpu_custom_call.1} parent=1 // pred_check
      _
    $region15: #{tpu_custom_call.1} parent=1 // pred_check_branch
      %184 = sbr.rel (0) target = $region17
    $region16: #{tpu_custom_call.1} parent=1 // pred_region
      %185 = dma.done [#allocation3], 16
    $region17: #{tpu_custom_call.1} parent=1 // pred_fallthru
      _
    %186 = vsyncpa [#allocation3], 1

</llo_original>
